<compile_context>
chip_gen: v6e
topology: v6e:2x2x1
jax: 0.10.0
libtpu: 0.0.40
codegen_flags: <defaults>
</compile_context>

<pallas_src>
import jax
import jax.numpy as jnp
from jax.experimental import pallas as pl
from jax.experimental.pallas import tpu as pltpu


def _round_up(x, m):
    return ((x + m - 1) // m) * m


def _cdiv(a, b):
    return -(-a // b)


def _a2c_fused_kernel(x_ref, w12_ref, b12_ref, w3_ref, b3_ref, out_ref):
    """One batch tile: h = leaky_relu(x @ W12 + b12); out = h @ W3 + b3.

    Compute dtype follows the packed weight dtype (bf16 fast path / f32 exact
    path); accumulation is always f32 on the MXU.
    """
    x = x_ref[...].astype(w12_ref.dtype)
    h = jnp.dot(x, w12_ref[...], preferred_element_type=jnp.float32)
    h = h + b12_ref[...]
    # PyTorch F.leaky_relu default negative_slope = 0.01 (max form: 2 VALU ops)
    h = jnp.maximum(h, 0.01 * h)
    h = h.astype(w3_ref.dtype)
    o = jnp.dot(h, w3_ref[...], preferred_element_type=jnp.float32)
    out_ref[...] = (o + b3_ref[...]).astype(out_ref.dtype)


def pack_params(p, out_dim, *, weight_dtype=jnp.bfloat16):
    """Fold fcn1 into fcn2 and pack actor/critic into wide lane-dense tensors.

    Folding/packing is done in f32; matmul weights are cast to `weight_dtype`
    at the end (bf16 by default: MXU-native, half the weight DMA bytes).
    Biases stay f32 (added after f32 accumulation, negligible size).

    Returns:
      w12: (in_dim, 2*h2p)   [ actor-half | critic-half ]
      b12: (1, 2*h2p)        f32
      w3 : (2*h2p, OUT_PAD)  block-diagonal: actor cols [0, out_dim), critic
                             col out_dim, rest zero
      b3 : (1, OUT_PAD)      f32
    """
    h2 = p["aw2"].shape[1]
    h2p = _round_up(h2, 128)
    outp = _round_up(out_dim + 1, 128)

    def fold(w1, b1, w2, b2):
        w12 = w1 @ w2                      # (in_dim, h2)  -- exact fold, no act
        b12 = b1 @ w2 + b2                 # (1, h2)
        w12 = jnp.pad(w12, ((0, 0), (0, h2p - h2)))
        b12 = jnp.pad(b12, ((0, 0), (0, h2p - h2)))
        return w12, b12

    aw12, ab12 = fold(p["aw1"], p["ab1"], p["aw2"], p["ab2"])
    cw12, cb12 = fold(p["cw1"], p["cb1"], p["cw2"], p["cb2"])
    w12 = jnp.concatenate([aw12, cw12], axis=1)        # (in_dim, 2*h2p)
    b12 = jnp.concatenate([ab12, cb12], axis=1)        # (1, 2*h2p)

    w3 = jnp.zeros((2 * h2p, outp), jnp.float32)
    w3 = w3.at[:h2, :out_dim].set(p["aw3"])                         # actor
    w3 = w3.at[h2p:h2p + h2, out_dim:out_dim + 1].set(p["cw3"])     # critic
    b3 = jnp.zeros((1, outp), jnp.float32)
    b3 = b3.at[:, :out_dim].set(p["ab3"])
    b3 = b3.at[:, out_dim:out_dim + 1].set(p["cb3"])

    return dict(w12=w12.astype(weight_dtype), b12=b12,
                w3=w3.astype(weight_dtype), b3=b3)


def a2c_forward(x, packed, *, tb=4096, min_steps=4, out_dtype=jnp.bfloat16,
                single_buffer_weights=True):
    """Run the fused kernel. Returns the packed (B_pad, OUT_PAD) output slab.

    Slab layout (consume directly downstream; avoid re-compacting over HBM):
      columns [0, out_dim)          -> actor logits
      column  out_dim               -> critic value
      columns (out_dim, OUT_PAD)    -> zero-weight padding columns
      rows    [B, B_pad)            -> batch-padding rows (ignore)
    Use split_heads() only when separate dense arrays are truly required.
    """
    B, in_dim = x.shape
    w12, b12, w3, b3 = packed["w12"], packed["b12"], packed["w3"], packed["b3"]
    two_h2p = w12.shape[1]
    outp = w3.shape[1]

    # Balanced batch tiling:
    #  * big tiles amortize the ~0.35us/step pipeline overhead,
    #  * but keep >= min_steps grid steps (megacore sharding on v7x + DMA /
    #    writeback overlap), and keep padding waste < 1 tile.
    # VMEM at tb=4096: ~2*TB*in_dim*4 (x, f32) + TB*2*h2p*4 (h temp) +
    # 2*TB*outp*2 (bf16 out) + weights -> well under the 32 MiB scoped default
    # on v5e/v6e/v7x.  TODO(synk): raise vmem_limit_bytes only if tb is pushed
    # past ~8192 on v5e/v6e (keep per-core working set <= ~24 MB on v7x).
    tb_eff = max(8, min(tb, _round_up(_cdiv(B, min_steps), 8)))
    n_tiles = max(1, _cdiv(B, tb_eff))
    TB = max(8, _round_up(_cdiv(B, n_tiles), 8))
    B_pad = n_tiles * TB
    if B_pad != B:
        x = jnp.pad(x, ((0, B_pad - B), (0, 0)))

    def build(single_buf):
        res_kw = {"pipeline_mode": pl.Buffered(1)} if single_buf else {}
        return pl.pallas_call(
            _a2c_fused_kernel,
            out_shape=jax.ShapeDtypeStruct((B_pad, outp), out_dtype),
            grid_spec=pltpu.PrefetchScalarGridSpec(
                num_scalar_prefetch=0,
                grid=(n_tiles,),
                in_specs=[
                    pl.BlockSpec((TB, in_dim), lambda i: (i, 0)),              # x tile
                    pl.BlockSpec((in_dim, two_h2p), lambda i: (0, 0), **res_kw),  # resident
                    pl.BlockSpec((1, two_h2p), lambda i: (0, 0), **res_kw),       # resident
                    pl.BlockSpec((two_h2p, outp), lambda i: (0, 0), **res_kw),    # resident
                    pl.BlockSpec((1, outp), lambda i: (0, 0), **res_kw),          # resident
                ],
                out_specs=pl.BlockSpec((TB, outp), lambda i: (i, 0)),
            ),
            compiler_params=pltpu.CompilerParams(
                dimension_semantics=("parallel",),
            ),
        )

    if single_buffer_weights:
        try:
            return build(True)(x, w12, b12, w3, b3)
        except Exception:
            # pipeline_mode=pl.Buffered(1) unsupported on this jax build;
            # fall back to default double-buffered resident weights.
            pass
    return build(False)(x, w12, b12, w3, b3)


def split_heads(out_slab, batch, out_dim):
    """Materialize the two heads as separate arrays.

    Note: this is an extra HBM compaction pass; prefer consuming the packed
    slab directly downstream whenever possible.
    """
    return out_slab[:batch, :out_dim], out_slab[:batch, out_dim:out_dim + 1]


def init_params(key, in_dim, out_dim):
    """Deterministic init mimicking torch.nn.Linear default U[-1/sqrt(fan_in), ...].

    Weights are stored as (in_features, out_features) = W^T relative to
    PyTorch's (out, in); biases as (1, out_features).
    """
    h1 = max(64, in_dim * 2)
    h2 = max(128, in_dim * 4)

    def linear(k, fan_in, fan_out):
        kw, kb = jax.random.split(k)
        bound = 1.0 / jnp.sqrt(fan_in)
        w = jax.random.uniform(kw, (fan_in, fan_out), jnp.float32, -bound, bound)
        b = jax.random.uniform(kb, (1, fan_out), jnp.float32, -bound, bound)
        return w, b

    keys = jax.random.split(key, 6)
    aw1, ab1 = linear(keys[0], in_dim, h1)
    aw2, ab2 = linear(keys[1], h1, h2)
    aw3, ab3 = linear(keys[2], h2, out_dim)
    cw1, cb1 = linear(keys[3], in_dim, h1)
    cw2, cb2 = linear(keys[4], h1, h2)
    cw3, cb3 = linear(keys[5], h2, 1)

    return dict(aw1=aw1, ab1=ab1, aw2=aw2, ab2=ab2, aw3=aw3, ab3=ab3,
                cw1=cw1, cb1=cb1, cw2=cw2, cb2=cb2, cw3=cw3, cb3=cb3)


def reference_forward(x, p):
    """Plain-JAX reference matching the PyTorch forward exactly (3 Linears/head)."""
    a = x @ p["aw1"] + p["ab1"]
    a = a @ p["aw2"] + p["ab2"]
    a = jnp.where(a > 0, a, 0.01 * a)
    a = a @ p["aw3"] + p["ab3"]
    c = x @ p["cw1"] + p["cb1"]
    c = c @ p["cw2"] + p["cb2"]
    c = jnp.where(c > 0, c, 0.01 * c)
    c = c @ p["cw3"] + p["cb3"]
    return a, c


if __name__ == "__main__":
    key = jax.random.PRNGKey(0)
    k_x, k_p = jax.random.split(key)

    B, in_dim, out_dim = 8, 16, 8
    x = jax.random.normal(k_x, (B, in_dim), jnp.float32)
    params = init_params(k_p, in_dim, out_dim)
    a_ref, c_ref = reference_forward(x, params)

    # 1) Exact-precision path (f32 weights / f32 out): tight tolerance proves
    #    the fold/pack/tiling plumbing is correct.
    packed_f32 = pack_params(params, out_dim, weight_dtype=jnp.float32)
    slab_f32 = a2c_forward(x, packed_f32, out_dtype=jnp.float32)
    jax.block_until_ready(slab_f32)
    a32, c32 = split_heads(slab_f32, B, out_dim)
    assert a32.shape == (B, out_dim) and c32.shape == (B, 1)
    assert jnp.allclose(a32, a_ref, atol=1e-4, rtol=1e-4)
    assert jnp.allclose(c32, c_ref, atol=1e-4, rtol=1e-4)

    # 2) Fast path (bf16 weights/activations/output, f32 accumulation): the
    #    production configuration from the perf review; looser tolerance.
    packed_bf16 = pack_params(params, out_dim)          # bf16 weights
    slab = a2c_forward(x, packed_bf16)                   # bf16 output slab
    jax.block_until_ready(slab)
    a_bf, c_bf = split_heads(slab, B, out_dim)
    a_bf = a_bf.astype(jnp.float32)
    c_bf = c_bf.astype(jnp.float32)
    assert a_bf.shape == (B, out_dim) and c_bf.shape == (B, 1)
    assert jnp.allclose(a_bf, a_ref, atol=3e-2, rtol=3e-2)
    assert jnp.allclose(c_bf, c_ref, atol=3e-2, rtol=3e-2)

    print("KERNEL_OK")
</pallas_src>

<mosaic_0001>
module attributes {stable_mosaic.version = 11 : i64} {
  func.func @_a2c_fused_kernel(%arg0: i32, %arg1: memref<8x16xf32, #tpu.memory_space<vmem>>, %arg2: memref<16x256xf32, #tpu.memory_space<vmem>>, %arg3: memref<1x256xf32, #tpu.memory_space<vmem>>, %arg4: memref<256x128xf32, #tpu.memory_space<vmem>>, %arg5: memref<1x128xf32, #tpu.memory_space<vmem>>, %arg6: memref<8x128xf32, #tpu.memory_space<vmem>>) attributes {dimension_semantics = [#tpu.dimension_semantics<parallel>], iteration_bounds = array<i64: 1>, scalar_prefetch = 0 : i64, scratch_operands = 0 : i64, tpu.core_type = #tpu.core_type<tc>, window_params = [{transform_indices = @transform_0, window_bounds = array<i64: 8, 16>}, {pipeline_mode = #tpu.pipeline_mode<synchronous>, transform_indices = @transform_1, window_bounds = array<i64: 16, 256>}, {pipeline_mode = #tpu.pipeline_mode<synchronous>, transform_indices = @transform_2, window_bounds = array<i64: 1, 256>}, {pipeline_mode = #tpu.pipeline_mode<synchronous>, transform_indices = @transform_3, window_bounds = array<i64: 256, 128>}, {pipeline_mode = #tpu.pipeline_mode<synchronous>, transform_indices = @transform_4, window_bounds = array<i64: 1, 128>}, {transform_indices = @transform_5, window_bounds = array<i64: 8, 128>}]} {
    %c0 = arith.constant 0 : index
    %c0_0 = arith.constant 0 : index
    %0 = vector.load %arg1[%c0, %c0_0] : memref<8x16xf32, #tpu.memory_space<vmem>>, vector<8x16xf32>
    %c0_1 = arith.constant 0 : index
    %c0_2 = arith.constant 0 : index
    %1 = vector.load %arg2[%c0_1, %c0_2] : memref<16x256xf32, #tpu.memory_space<vmem>>, vector<16x256xf32>
    %cst = arith.constant dense<0.000000e+00> : vector<8x256xf32>
    %2 = tpu.matmul %0, %1, %cst {dimension_numbers = #tpu.dot_dimension_numbers<[1], [0], [0], [1], [0, 0, 1, 1], [], []>} : vector<8x16xf32>, vector<16x256xf32>, vector<8x256xf32> -> vector<8x256xf32>
    %c0_3 = arith.constant 0 : index
    %c0_4 = arith.constant 0 : index
    %3 = vector.load %arg3[%c0_3, %c0_4] : memref<1x256xf32, #tpu.memory_space<vmem>>, vector<1x256xf32>
    %4 = vector.broadcast %3 : vector<1x256xf32> to vector<8x256xf32>
    %5 = arith.addf %2, %4 : vector<8x256xf32>
    %cst_5 = arith.constant 0.00999999977 : f32
    %6 = vector.broadcast %cst_5 : f32 to vector<8x256xf32>
    %7 = arith.mulf %6, %5 : vector<8x256xf32>
    %8 = arith.maximumf %5, %7 : vector<8x256xf32>
    %c0_6 = arith.constant 0 : index
    %c0_7 = arith.constant 0 : index
    %9 = vector.load %arg4[%c0_6, %c0_7] : memref<256x128xf32, #tpu.memory_space<vmem>>, vector<256x128xf32>
    %cst_8 = arith.constant dense<0.000000e+00> : vector<8x128xf32>
    %10 = tpu.matmul %8, %9, %cst_8 {dimension_numbers = #tpu.dot_dimension_numbers<[1], [0], [0], [1], [0, 0, 1, 1], [], []>} : vector<8x256xf32>, vector<256x128xf32>, vector<8x128xf32> -> vector<8x128xf32>
    %c0_9 = arith.constant 0 : index
    %c0_10 = arith.constant 0 : index
    %11 = vector.load %arg5[%c0_9, %c0_10] : memref<1x128xf32, #tpu.memory_space<vmem>>, vector<1x128xf32>
    %12 = vector.broadcast %11 : vector<1x128xf32> to vector<8x128xf32>
    %13 = arith.addf %10, %12 : vector<8x128xf32>
    %c0_11 = arith.constant 0 : index
    %c0_12 = arith.constant 0 : index
    %14 = vector.load %arg6[%c0_11, %c0_12] : memref<8x128xf32, #tpu.memory_space<vmem>>, vector<8x128xf32>
    tpu.vector_store %arg6[%c0_11, %c0_12], %13 {strides = array<i32>} : memref<8x128xf32, #tpu.memory_space<vmem>>, vector<8x128xf32>,
    return
  }
  func.func @transform_0(%arg0: i32) -> (i32, i32) {
    %c0_i32 = arith.constant 0 : i32
    %c0_i32_0 = arith.constant 0 : i32
    return %arg0, %c0_i32 : i32, i32
  }
  func.func @transform_1(%arg0: i32) -> (i32, i32) {
    %c0_i32 = arith.constant 0 : i32
    %c0_i32_0 = arith.constant 0 : i32
    %c0_i32_1 = arith.constant 0 : i32
    return %c0_i32, %c0_i32_0 : i32, i32
  }
  func.func @transform_2(%arg0: i32) -> (i32, i32) {
    %c0_i32 = arith.constant 0 : i32
    %c0_i32_0 = arith.constant 0 : i32
    %c0_i32_1 = arith.constant 0 : i32
    return %c0_i32, %c0_i32_0 : i32, i32
  }
  func.func @transform_3(%arg0: i32) -> (i32, i32) {
    %c0_i32 = arith.constant 0 : i32
    %c0_i32_0 = arith.constant 0 : i32
    %c0_i32_1 = arith.constant 0 : i32
    return %c0_i32, %c0_i32_0 : i32, i32
  }
  func.func @transform_4(%arg0: i32) -> (i32, i32) {
    %c0_i32 = arith.constant 0 : i32
    %c0_i32_0 = arith.constant 0 : i32
    %c0_i32_1 = arith.constant 0 : i32
    return %c0_i32, %c0_i32_0 : i32, i32
  }
  func.func @transform_5(%arg0: i32) -> (i32, i32) {
    %c0_i32 = arith.constant 0 : i32
    %c0_i32_0 = arith.constant 0 : i32
    return %arg0, %c0_i32 : i32, i32
  }
}

module attributes {stable_mosaic.version = 11 : i64} {
  func.func @_a2c_fused_kernel(%arg0: i32, %arg1: memref<8x16xf32, #tpu.memory_space<vmem>>, %arg2: memref<16x256xf32, #tpu.memory_space<vmem>>, %arg3: memref<1x256xf32, #tpu.memory_space<vmem>>, %arg4: memref<256x128xf32, #tpu.memory_space<vmem>>, %arg5: memref<1x128xf32, #tpu.memory_space<vmem>>, %arg6: memref<8x128xf32, #tpu.memory_space<vmem>>) attributes {dimension_semantics = [#tpu.dimension_semantics<parallel>], iteration_bounds = array<i64: 1>, scalar_prefetch = 0 : i64, scratch_operands = 0 : i64, tpu.core_type = #tpu.core_type<tc>, window_params = [{transform_indices = @transform_0, window_bounds = array<i64: 8, 16>}, {pipeline_mode = #tpu.pipeline_mode<synchronous>, transform_indices = @transform_1, window_bounds = array<i64: 16, 256>}, {pipeline_mode = #tpu.pipeline_mode<synchronous>, transform_indices = @transform_2, window_bounds = array<i64: 1, 256>}, {pipeline_mode = #tpu.pipeline_mode<synchronous>, transform_indices = @transform_3, window_bounds = array<i64: 256, 128>}, {pipeline_mode = #tpu.pipeline_mode<synchronous>, transform_indices = @transform_4, window_bounds = array<i64: 1, 128>}, {transform_indices = @transform_5, window_bounds = array<i64: 8, 128>}]} {
    %c0 = arith.constant 0 : index
    %c0_0 = arith.constant 0 : index
    %0 = vector.load %arg1[%c0, %c0_0] : memref<8x16xf32, #tpu.memory_space<vmem>>, vector<8x16xf32>
    %c0_1 = arith.constant 0 : index
    %c0_2 = arith.constant 0 : index
    %1 = vector.load %arg2[%c0_1, %c0_2] : memref<16x256xf32, #tpu.memory_space<vmem>>, vector<16x256xf32>
    %cst = arith.constant dense<0.000000e+00> : vector<8x256xf32>
    %2 = tpu.matmul %0, %1, %cst {dimension_numbers = #tpu.dot_dimension_numbers<[1], [0], [0], [1], [0, 0, 1, 1], [], []>} : vector<8x16xf32>, vector<16x256xf32>, vector<8x256xf32> -> vector<8x256xf32>
    %c0_3 = arith.constant 0 : index
    %c0_4 = arith.constant 0 : index
    %3 = vector.load %arg3[%c0_3, %c0_4] : memref<1x256xf32, #tpu.memory_space<vmem>>, vector<1x256xf32>
    %4 = vector.broadcast %3 : vector<1x256xf32> to vector<8x256xf32>
    %5 = arith.addf %2, %4 : vector<8x256xf32>
    %cst_5 = arith.constant 0.00999999977 : f32
    %6 = vector.broadcast %cst_5 : f32 to vector<8x256xf32>
    %7 = arith.mulf %6, %5 : vector<8x256xf32>
    %8 = arith.maximumf %5, %7 : vector<8x256xf32>
    %c0_6 = arith.constant 0 : index
    %c0_7 = arith.constant 0 : index
    %9 = vector.load %arg4[%c0_6, %c0_7] : memref<256x128xf32, #tpu.memory_space<vmem>>, vector<256x128xf32>
    %cst_8 = arith.constant dense<0.000000e+00> : vector<8x128xf32>
    %10 = tpu.matmul %8, %9, %cst_8 {dimension_numbers = #tpu.dot_dimension_numbers<[1], [0], [0], [1], [0, 0, 1, 1], [], []>} : vector<8x256xf32>, vector<256x128xf32>, vector<8x128xf32> -> vector<8x128xf32>
    %c0_9 = arith.constant 0 : index
    %c0_10 = arith.constant 0 : index
    %11 = vector.load %arg5[%c0_9, %c0_10] : memref<1x128xf32, #tpu.memory_space<vmem>>, vector<1x128xf32>
    %12 = vector.broadcast %11 : vector<1x128xf32> to vector<8x128xf32>
    %13 = arith.addf %10, %12 : vector<8x128xf32>
    %c0_11 = arith.constant 0 : index
    %c0_12 = arith.constant 0 : index
    %14 = vector.load %arg6[%c0_11, %c0_12] : memref<8x128xf32, #tpu.memory_space<vmem>>, vector<8x128xf32>
    tpu.vector_store %arg6[%c0_11, %c0_12], %13 {strides = array<i32>} : memref<8x128xf32, #tpu.memory_space<vmem>>, vector<8x128xf32>,
    return
  }
  func.func @transform_0(%arg0: i32) -> (i32, i32) {
    %c0_i32 = arith.constant 0 : i32
    %c0_i32_0 = arith.constant 0 : i32
    return %arg0, %c0_i32 : i32, i32
  }
  func.func @transform_1(%arg0: i32) -> (i32, i32) {
    %c0_i32 = arith.constant 0 : i32
    %c0_i32_0 = arith.constant 0 : i32
    %c0_i32_1 = arith.constant 0 : i32
    return %c0_i32, %c0_i32_0 : i32, i32
  }
  func.func @transform_2(%arg0: i32) -> (i32, i32) {
    %c0_i32 = arith.constant 0 : i32
    %c0_i32_0 = arith.constant 0 : i32
    %c0_i32_1 = arith.constant 0 : i32
    return %c0_i32, %c0_i32_0 : i32, i32
  }
  func.func @transform_3(%arg0: i32) -> (i32, i32) {
    %c0_i32 = arith.constant 0 : i32
    %c0_i32_0 = arith.constant 0 : i32
    %c0_i32_1 = arith.constant 0 : i32
    return %c0_i32, %c0_i32_0 : i32, i32
  }
  func.func @transform_4(%arg0: i32) -> (i32, i32) {
    %c0_i32 = arith.constant 0 : i32
    %c0_i32_0 = arith.constant 0 : i32
    %c0_i32_1 = arith.constant 0 : i32
    return %c0_i32, %c0_i32_0 : i32, i32
  }
  func.func @transform_5(%arg0: i32) -> (i32, i32) {
    %c0_i32 = arith.constant 0 : i32
    %c0_i32_0 = arith.constant 0 : i32
    return %arg0, %c0_i32 : i32, i32
  }
}

</mosaic_0001>

<llo_original>
// kernel: tpu_custom_call.1
$region0: #{tpu_custom_call.1}
  #allocation0 [shape = 'u32[]', space=smem, size = 0x4, offset = 0x4, fixed_abs, tag = 'smem constant byte address 0x4 - core index']
  #allocation1 [shape = 'u32[144,128]{1,0:T(1,128)}', space=vmem, size = 0x12000, scoped, tag = 'internal scratch']
  %s0 = inlined_call_operand.hbm [shape: f32[8,16], index: 0, kind: input, shape index: {}]
  %s1 = inlined_call_operand.hbm [shape: f32[16,256], index: 1, kind: input, shape index: {}]
  %s2 = inlined_call_operand.vmem [shape: f32[1,256], index: 2, kind: input, shape index: {}]
  %s3 = inlined_call_operand.hbm [shape: f32[256,128], index: 3, kind: input, shape index: {}]
  %s4 = inlined_call_operand.vmem [shape: f32[1,128], index: 4, kind: input, shape index: {}]
  %s5 = inlined_call_operand.hbm [shape: f32[8,128], index: 5, kind: output, shape index: {}]
  %s6 = sld [smem:[#allocation0]]
  $region42: #{tpu_custom_call.1} parent=0
    _
  %s8 = ssub.s32 1, %s6
  %s9 = scalar_select 0, %s8, %s6
  $region1: #{tpu_custom_call.1} parent=0
    #allocation2 [shape = 'u8[4096]{0}', space=vmem, size = 0x1000, scoped, tag = 'input window, operand 0, single buffered']
    #allocation3 [shape = 's32[1]{0}', space=sflag, size = 0x4, scoped, tag = 'scoped memory for tpu_custom_call.1']
    #allocation4 [shape = 's32[1]{0}', space=sflag, size = 0x4, scoped, tag = 'scoped memory for tpu_custom_call.1']
    #allocation5 [shape = 'u8[16384]{0}', space=vmem, size = 0x4000, scoped, tag = 'input window, operand 1, single buffered']
    #allocation6 [shape = 's32[1]{0}', space=sflag, size = 0x4, scoped, tag = 'scoped memory for tpu_custom_call.1']
    #allocation7 [shape = 'u8[131072]{0}', space=vmem, size = 0x20000, scoped, tag = 'input window, operand 3, single buffered']
    #allocation8 [shape = 'u8[4096]{0}', space=vmem, size = 0x1000, scoped, tag = 'output window, operand 0, single buffered']
    %10 = vsyncpa [#allocation3], 0
    %11 = vsyncpa [#allocation6], 0
    %12 = vsyncpa [#allocation4], 0
    // Predicated region
    $region2: #{tpu_custom_call.1} parent=1 // pred_check
      _
    $region3: #{tpu_custom_call.1} parent=1 // pred_check_branch
      %14 = sbr.rel (0) target = $region5
    $region4: #{tpu_custom_call.1} parent=1 // pred_region
      %s16 = ssub.s32 128, 128
      %17 = vsyncadd [#allocation3], %s16
      %s19 = sshll.u32 [#allocation2], 4
      %s20 = int_to_ptr.vmem [resolvable:$true] %s19
      %22 = dma.hbm_to_vmem [thread:$0]  %s0, 128, %s20, [#allocation3]
    $region5: #{tpu_custom_call.1} parent=1 // pred_fallthru
      _
    // Predicated region
    $region6: #{tpu_custom_call.1} parent=1 // pred_check
      _
    $region7: #{tpu_custom_call.1} parent=1 // pred_check_branch
      %24 = sbr.rel (0) target = $region9
    $region8: #{tpu_custom_call.1} parent=1 // pred_region
      %s26 = ssub.s32 512, 512
      %27 = vsyncadd [#allocation6], %s26
      %s28 = sshll.u32 [#allocation5], 4
      %s29 = int_to_ptr.vmem [resolvable:$true] %s28
      %34 = dma.hbm_to_vmem [thread:$0]  %s1, 512, %s29, [#allocation6], 256, 256, 16
    $region9: #{tpu_custom_call.1} parent=1 // pred_fallthru
      _
    // Predicated region
    $region10: #{tpu_custom_call.1} parent=1 // pred_check
      _
    $region11: #{tpu_custom_call.1} parent=1 // pred_check_branch
      %36 = sbr.rel (0) target = $region13
    $region12: #{tpu_custom_call.1} parent=1 // pred_region
      _
    $region13: #{tpu_custom_call.1} parent=1 // pred_fallthru
      _
    // Predicated region
    $region14: #{tpu_custom_call.1} parent=1 // pred_check
      _
    $region15: #{tpu_custom_call.1} parent=1 // pred_check_branch
      %38 = sbr.rel (0) target = $region17
    $region16: #{tpu_custom_call.1} parent=1 // pred_region
      %s40 = ssub.s32 4096, 4096
      %41 = vsyncadd [#allocation6], %s40
      %s42 = sshll.u32 [#allocation7], 4
      %s43 = int_to_ptr.vmem [resolvable:$true] %s42
      %48 = dma.hbm_to_vmem [thread:$0]  %s3, 4096, %s43, [#allocation6], 128, 128, 8
    $region17: #{tpu_custom_call.1} parent=1 // pred_fallthru
      _
    // Predicated region
    $region18: #{tpu_custom_call.1} parent=1 // pred_check
      _
    $region19: #{tpu_custom_call.1} parent=1 // pred_check_branch
      %50 = sbr.rel (0) target = $region21
    $region20: #{tpu_custom_call.1} parent=1 // pred_region
      _
    $region21: #{tpu_custom_call.1} parent=1 // pred_fallthru
      _
    // Predicated region
    $region22: #{tpu_custom_call.1} parent=1 // pred_check
      _
    $region23: #{tpu_custom_call.1} parent=1 // pred_check_branch
      %52 = sbr.rel (0) target = $region25
    $region24: #{tpu_custom_call.1} parent=1 // pred_region
      %53 = dma.done [#allocation3], 128
    $region25: #{tpu_custom_call.1} parent=1 // pred_fallthru
      _
    // Predicated region
    $region26: #{tpu_custom_call.1} parent=1 // pred_check
      _
    $region27: #{tpu_custom_call.1} parent=1 // pred_check_branch
      %55 = sbr.rel (0) target = $region29
    $region28: #{tpu_custom_call.1} parent=1 // pred_region
      %56 = dma.done [#allocation6], 512
    $region29: #{tpu_custom_call.1} parent=1 // pred_fallthru
      _
    // Predicated region
    $region30: #{tpu_custom_call.1} parent=1 // pred_check
      _
    $region31: #{tpu_custom_call.1} parent=1 // pred_check_branch
      %58 = sbr.rel (0) target = $region33
    $region32: #{tpu_custom_call.1} parent=1 // pred_region
      %59 = dma.done [#allocation6], 4096
    $region33: #{tpu_custom_call.1} parent=1 // pred_fallthru
      _
    %v60 = vld [vmem:[#allocation2] sm:$0xff]
    %v61 = vld [vmem:[#allocation5] sm:$0xff]
    %v62 = vld [vmem:[#allocation5 + $0x8] sm:$0xff]
    %v63 = vld [vmem:[#allocation5 + $0x10] sm:$0xff]
    %v64 = vld [vmem:[#allocation5 + $0x18] sm:$0xff]
    %v65 = vld [vmem:[%s2] sm:$0x3]
    %v67 = vlaneseq
    %v68 = vshrl.u32 %v67, 7
    %v69 = vsub.s32 0, %v68
    %v70 = vrot.slane %v65, %v69
    %v71 = vlaneseq
    %v72 = vshrl.u32 %v71, 7
    %v73 = vsub.s32 1, %v72
    %v74 = vrot.slane %v65, %v73
    %vm77 = vcmask 130048
    %v79 = vsel %vm77, %v60, 0
    %81 = vmatprep.subr.mxu0 0.0
    %82 = vmatpush1.msra.mxu0 0.0
    %83 = vmatprep.subr.mxu0 0.0
    %84 = vmatpush1.msra.mxu0 0.0
    %85 = vmatprep.subr.mxu0 0.0
    %86 = vmatpush1.msra.mxu0 0.0
    %87 = vmatprep.subr.mxu0 0.0
    %88 = vmatpush1.msra.mxu0 0.0
    %89 = vmatprep.subr.mxu0 0.0
    %90 = vmatpush1.msra.mxu0 0.0
    %91 = vmatprep.subr.mxu0 0.0
    %92 = vmatpush1.msra.mxu0 0.0
    %93 = vmatprep.subr.mxu0 0.0
    %94 = vmatpush1.msra.mxu0 0.0
    %95 = vmatprep.subr.mxu0 0.0
    %96 = vmatpush1.msra.mxu0 0.0
    %97 = vmatprep.subr.mxu0 0.0
    %98 = vmatpush1.msra.mxu0 0.0
    %99 = vmatprep.subr.mxu0 0.0
    %100 = vmatpush1.msra.mxu0 0.0
    %101 = vmatprep.subr.mxu0 0.0
    %102 = vmatpush1.msra.mxu0 0.0
    %103 = vmatprep.subr.mxu0 0.0
    %104 = vmatpush1.msra.mxu0 0.0
    %105 = vmatprep.subr.mxu0 0.0
    %106 = vmatpush1.msra.mxu0 0.0
    %107 = vmatprep.subr.mxu0 0.0
    %108 = vmatpush1.msra.mxu0 0.0
    %109 = vmatprep.subr.mxu0 %v64
    %110 = vmatpush1.msra.mxu0 %v63
    %111 = vmatprep.subr.mxu0 %v62
    %112 = vmatpush1.msra.mxu0 %v61
    %113 = vmatprep.subr.mxu0 0.0
    %114 = vmatpush2.msra.mxu0 0.0
    %115 = vmatprep.subr.mxu0 0.0
    %116 = vmatpush2.msra.mxu0 0.0
    %117 = vmatprep.subr.mxu0 0.0
    %118 = vmatpush2.msra.mxu0 0.0
    %119 = vmatprep.subr.mxu0 0.0
    %120 = vmatpush2.msra.mxu0 0.0
    %121 = vmatprep.subr.mxu0 0.0
    %122 = vmatpush2.msra.mxu0 0.0
    %123 = vmatprep.subr.mxu0 0.0
    %124 = vmatpush2.msra.mxu0 0.0
    %125 = vmatprep.subr.mxu0 0.0
    %126 = vmatpush2.msra.mxu0 0.0
    %127 = vmatprep.subr.mxu0 0.0
    %128 = vmatpush2.msra.mxu0 0.0
    %129 = vmatprep.subr.mxu0 0.0
    %130 = vmatpush2.msra.mxu0 0.0
    %131 = vmatprep.subr.mxu0 0.0
    %132 = vmatpush2.msra.mxu0 0.0
    %133 = vmatprep.subr.mxu0 0.0
    %134 = vmatpush2.msra.mxu0 0.0
    %135 = vmatprep.subr.mxu0 0.0
    %136 = vmatpush2.msra.mxu0 0.0
    %137 = vmatprep.subr.mxu0 0.0
    %138 = vmatpush2.msra.mxu0 0.0
    %139 = vmatprep.subr.mxu0 0.0
    %140 = vmatpush2.msra.mxu0 0.0
    %141 = vmatprep.subr.mxu0 0.0
    %142 = vmatpush2.msra.mxu0 0.0
    %143 = vmatprep.subr.mxu0 0.0
    %144 = vmatpush2.msra.mxu0 0.0
    %145 = vmatprep.mubr.f32.mxu0 0.0
    %146 = vmatmul.mubr.f32.gmra.mxu0 %v79
    %v147 = vpop.f32.mrf.mxu0
    %v148 = vadd.f32 %v70, %v147
    %v149 = vpop.f32.mrf.mxu0
    %v150 = vadd.f32 %v74, %v149
    %151 = vdwg.mxu0
    %v152 = vmul.f32 %v148, 0.01
    %v153 = vmul.f32 %v150, 0.01
    %v154 = vmax.f32 %v148, %v152
    %v155 = vmax.f32 %v150, %v153
    %v156 = vld [vmem:[#allocation7] sm:$0xff]
    %v157 = vld [vmem:[#allocation7 + $0x8] sm:$0xff]
    %v158 = vld [vmem:[#allocation7 + $0x10] sm:$0xff]
    %v159 = vld [vmem:[#allocation7 + $0x18] sm:$0xff]
    %v160 = vld [vmem:[#allocation7 + $0x20] sm:$0xff]
    %v161 = vld [vmem:[#allocation7 + $0x28] sm:$0xff]
    %v162 = vld [vmem:[#allocation7 + $0x30] sm:$0xff]
    %v163 = vld [vmem:[#allocation7 + $0x38] sm:$0xff]
    %v164 = vld [vmem:[#allocation7 + $0x40] sm:$0xff]
    %v165 = vld [vmem:[#allocation7 + $0x48] sm:$0xff]
    %v166 = vld [vmem:[#allocation7 + $0x50] sm:$0xff]
    %v167 = vld [vmem:[#allocation7 + $0x58] sm:$0xff]
    %v168 = vld [vmem:[#allocation7 + $0x60] sm:$0xff]
    %v169 = vld [vmem:[#allocation7 + $0x68] sm:$0xff]
    %v170 = vld [vmem:[#allocation7 + $0x70] sm:$0xff]
    %v171 = vld [vmem:[#allocation7 + $0x78] sm:$0xff]
    %v172 = vld [vmem:[#allocation7 + $0x80] sm:$0xff]
    %v173 = vld [vmem:[#allocation7 + $0x88] sm:$0xff]
    %v174 = vld [vmem:[#allocation7 + $0x90] sm:$0xff]
    %v175 = vld [vmem:[#allocation7 + $0x98] sm:$0xff]
    %v176 = vld [vmem:[#allocation7 + $0xa0] sm:$0xff]
    %v177 = vld [vmem:[#allocation7 + $0xa8] sm:$0xff]
    %v178 = vld [vmem:[#allocation7 + $0xb0] sm:$0xff]
    %v179 = vld [vmem:[#allocation7 + $0xb8] sm:$0xff]
    %v180 = vld [vmem:[#allocation7 + $0xc0] sm:$0xff]
    %v181 = vld [vmem:[#allocation7 + $0xc8] sm:$0xff]
    %v182 = vld [vmem:[#allocation7 + $0xd0] sm:$0xff]
    %v183 = vld [vmem:[#allocation7 + $0xd8] sm:$0xff]
    %v184 = vld [vmem:[#allocation7 + $0xe0] sm:$0xff]
    %v185 = vld [vmem:[#allocation7 + $0xe8] sm:$0xff]
    %v186 = vld [vmem:[#allocation7 + $0xf0] sm:$0xff]
    %v187 = vld [vmem:[#allocation7 + $0xf8] sm:$0xff]
    %v188 = vld [vmem:[%s4] sm:$0x1]
    %v190 = vlaneseq
    %v191 = vshrl.u32 %v190, 7
    %v192 = vsub.s32 0, %v191
    %v193 = vrot.slane %v188, %v192
    %195 = vmatprep.subr.mxu0 0.0
    %196 = vmatpush1.msra.mxu0 %v171
    %197 = vmatprep.subr.mxu0 0.0
    %198 = vmatpush1.msra.mxu0 %v170
    %199 = vmatprep.subr.mxu0 0.0
    %200 = vmatpush1.msra.mxu0 %v169
    %201 = vmatprep.subr.mxu0 0.0
    %202 = vmatpush1.msra.mxu0 %v168
    %203 = vmatprep.subr.mxu0 0.0
    %204 = vmatpush1.msra.mxu0 %v167
    %205 = vmatprep.subr.mxu0 0.0
    %206 = vmatpush1.msra.mxu0 %v166
    %207 = vmatprep.subr.mxu0 0.0
    %208 = vmatpush1.msra.mxu0 %v165
    %209 = vmatprep.subr.mxu0 0.0
    %210 = vmatpush1.msra.mxu0 %v164
    %211 = vmatprep.subr.mxu0 0.0
    %212 = vmatpush1.msra.mxu0 %v163
    %213 = vmatprep.subr.mxu0 0.0
    %214 = vmatpush1.msra.mxu0 %v162
    %215 = vmatprep.subr.mxu0 0.0
    %216 = vmatpush1.msra.mxu0 %v161
    %217 = vmatprep.subr.mxu0 0.0
    %218 = vmatpush1.msra.mxu0 %v160
    %219 = vmatprep.subr.mxu0 0.0
    %220 = vmatpush1.msra.mxu0 %v159
    %221 = vmatprep.subr.mxu0 0.0
    %222 = vmatpush1.msra.mxu0 %v158
    %223 = vmatprep.subr.mxu0 0.0
    %224 = vmatpush1.msra.mxu0 %v157
    %225 = vmatprep.subr.mxu0 0.0
    %226 = vmatpush1.msra.mxu0 %v156
    %227 = vmatprep.subr.mxu0 0.0
    %228 = vmatpush2.msra.mxu0 %v187
    %229 = vmatprep.subr.mxu0 0.0
    %230 = vmatpush2.msra.mxu0 %v186
    %231 = vmatprep.subr.mxu0 0.0
    %232 = vmatpush2.msra.mxu0 %v185
    %233 = vmatprep.subr.mxu0 0.0
    %234 = vmatpush2.msra.mxu0 %v184
    %235 = vmatprep.subr.mxu0 0.0
    %236 = vmatpush2.msra.mxu0 %v183
    %237 = vmatprep.subr.mxu0 0.0
    %238 = vmatpush2.msra.mxu0 %v182
    %239 = vmatprep.subr.mxu0 0.0
    %240 = vmatpush2.msra.mxu0 %v181
    %241 = vmatprep.subr.mxu0 0.0
    %242 = vmatpush2.msra.mxu0 %v180
    %243 = vmatprep.subr.mxu0 0.0
    %244 = vmatpush2.msra.mxu0 %v179
    %245 = vmatprep.subr.mxu0 0.0
    %246 = vmatpush2.msra.mxu0 %v178
    %247 = vmatprep.subr.mxu0 0.0
    %248 = vmatpush2.msra.mxu0 %v177
    %249 = vmatprep.subr.mxu0 0.0
    %250 = vmatpush2.msra.mxu0 %v176
    %251 = vmatprep.subr.mxu0 0.0
    %252 = vmatpush2.msra.mxu0 %v175
    %253 = vmatprep.subr.mxu0 0.0
    %254 = vmatpush2.msra.mxu0 %v174
    %255 = vmatprep.subr.mxu0 0.0
    %256 = vmatpush2.msra.mxu0 %v173
    %257 = vmatprep.subr.mxu0 0.0
    %258 = vmatpush2.msra.mxu0 %v172
    %259 = vmatprep.mubr.f32.mxu0 %v155
    %260 = vmatmul.mubr.f32.gmra.mxu0 %v154
    %v261 = vpop.f32.mrf.mxu0
    %v262 = vadd.f32 %v193, %v261
    %v263 = vpop.f32.mrf.mxu0
    %264 = vdwg.mxu0
    %265 = vst [vmem:[#allocation8] sm:$0xff] %v262
    // Predicated region
    $region34: #{tpu_custom_call.1} parent=1 // pred_check
      _
    $region35: #{tpu_custom_call.1} parent=1 // pred_check_branch
      %267 = sbr.rel (0) target = $region37
    $region36: #{tpu_custom_call.1} parent=1 // pred_region
      %s269 = ssub.s32 128, 128
      %270 = vsyncadd [#allocation4], %s269
      %s272 = sshll.u32 [#allocation8], 4
      %s273 = int_to_ptr.vmem [resolvable:$true] %s272
      %275 = dma.vmem_to_hbm [thread:$0]  %s273, 128, %s5, [#allocation4]
    $region37: #{tpu_custom_call.1} parent=1 // pred_fallthru
      _
    // Predicated region
    $region38: #{tpu_custom_call.1} parent=1 // pred_check
      _
    $region39: #{tpu_custom_call.1} parent=1 // pred_check_branch
      %277 = sbr.rel (0) target = $region41
    $region40: #{tpu_custom_call.1} parent=1 // pred_region
      %278 = dma.done [#allocation4], 128
    $region41: #{tpu_custom_call.1} parent=1 // pred_fallthru
      _
    %279 = vsyncpa [#allocation3], 1
    %280 = vsyncpa [#allocation6], 1
    %281 = vsyncpa [#allocation4], 1

// kernel: tpu_custom_call.1
$region0: #{tpu_custom_call.1}
  #allocation0 [shape = 'u32[]', space=smem, size = 0x4, offset = 0x4, fixed_abs, tag = 'smem constant byte address 0x4 - core index']
  #allocation1 [shape = 'u32[144,128]{1,0:T(1,128)}', space=vmem, size = 0x12000, scoped, tag = 'internal scratch']
  %s0 = inlined_call_operand.hbm [shape: f32[8,16], index: 0, kind: input, shape index: {}]
  %s1 = inlined_call_operand.hbm [shape: f32[16,256], index: 1, kind: input, shape index: {}]
  %s2 = inlined_call_operand.vmem [shape: f32[1,256], index: 2, kind: input, shape index: {}]
  %s3 = inlined_call_operand.hbm [shape: f32[256,128], index: 3, kind: input, shape index: {}]
  %s4 = inlined_call_operand.vmem [shape: f32[1,128], index: 4, kind: input, shape index: {}]
  %s5 = inlined_call_operand.hbm [shape: f32[8,128], index: 5, kind: output, shape index: {}]
  %s6 = sld [smem:[#allocation0]]
  $region42: #{tpu_custom_call.1} parent=0
    _
  %s8 = ssub.s32 1, %s6
  %s9 = scalar_select 0, %s8, %s6
  $region1: #{tpu_custom_call.1} parent=0
    #allocation2 [shape = 'u8[4096]{0}', space=vmem, size = 0x1000, scoped, tag = 'input window, operand 0, single buffered']
    #allocation3 [shape = 's32[1]{0}', space=sflag, size = 0x4, scoped, tag = 'scoped memory for tpu_custom_call.1']
    #allocation4 [shape = 's32[1]{0}', space=sflag, size = 0x4, scoped, tag = 'scoped memory for tpu_custom_call.1']
    #allocation5 [shape = 'u8[16384]{0}', space=vmem, size = 0x4000, scoped, tag = 'input window, operand 1, single buffered']
    #allocation6 [shape = 's32[1]{0}', space=sflag, size = 0x4, scoped, tag = 'scoped memory for tpu_custom_call.1']
    #allocation7 [shape = 'u8[131072]{0}', space=vmem, size = 0x20000, scoped, tag = 'input window, operand 3, single buffered']
    #allocation8 [shape = 'u8[4096]{0}', space=vmem, size = 0x1000, scoped, tag = 'output window, operand 0, single buffered']
    %10 = vsyncpa [#allocation3], 0
    %11 = vsyncpa [#allocation6], 0
    %12 = vsyncpa [#allocation4], 0
    // Predicated region
    $region2: #{tpu_custom_call.1} parent=1 // pred_check
      _
    $region3: #{tpu_custom_call.1} parent=1 // pred_check_branch
      %14 = sbr.rel (0) target = $region5
    $region4: #{tpu_custom_call.1} parent=1 // pred_region
      %s16 = ssub.s32 128, 128
      %17 = vsyncadd [#allocation3], %s16
      %s19 = sshll.u32 [#allocation2], 4
      %s20 = int_to_ptr.vmem [resolvable:$true] %s19
      %22 = dma.hbm_to_vmem [thread:$0]  %s0, 128, %s20, [#allocation3]
    $region5: #{tpu_custom_call.1} parent=1 // pred_fallthru
      _
    // Predicated region
    $region6: #{tpu_custom_call.1} parent=1 // pred_check
      _
    $region7: #{tpu_custom_call.1} parent=1 // pred_check_branch
      %24 = sbr.rel (0) target = $region9
    $region8: #{tpu_custom_call.1} parent=1 // pred_region
      %s26 = ssub.s32 512, 512
      %27 = vsyncadd [#allocation6], %s26
      %s28 = sshll.u32 [#allocation5], 4
      %s29 = int_to_ptr.vmem [resolvable:$true] %s28
      %34 = dma.hbm_to_vmem [thread:$0]  %s1, 512, %s29, [#allocation6], 256, 256, 16
    $region9: #{tpu_custom_call.1} parent=1 // pred_fallthru
      _
    // Predicated region
    $region10: #{tpu_custom_call.1} parent=1 // pred_check
      _
    $region11: #{tpu_custom_call.1} parent=1 // pred_check_branch
      %36 = sbr.rel (0) target = $region13
    $region12: #{tpu_custom_call.1} parent=1 // pred_region
      _
    $region13: #{tpu_custom_call.1} parent=1 // pred_fallthru
      _
    // Predicated region
    $region14: #{tpu_custom_call.1} parent=1 // pred_check
      _
    $region15: #{tpu_custom_call.1} parent=1 // pred_check_branch
      %38 = sbr.rel (0) target = $region17
    $region16: #{tpu_custom_call.1} parent=1 // pred_region
      %s40 = ssub.s32 4096, 4096
      %41 = vsyncadd [#allocation6], %s40
      %s42 = sshll.u32 [#allocation7], 4
      %s43 = int_to_ptr.vmem [resolvable:$true] %s42
      %48 = dma.hbm_to_vmem [thread:$0]  %s3, 4096, %s43, [#allocation6], 128, 128, 8
    $region17: #{tpu_custom_call.1} parent=1 // pred_fallthru
      _
    // Predicated region
    $region18: #{tpu_custom_call.1} parent=1 // pred_check
      _
    $region19: #{tpu_custom_call.1} parent=1 // pred_check_branch
      %50 = sbr.rel (0) target = $region21
    $region20: #{tpu_custom_call.1} parent=1 // pred_region
      _
    $region21: #{tpu_custom_call.1} parent=1 // pred_fallthru
      _
    // Predicated region
    $region22: #{tpu_custom_call.1} parent=1 // pred_check
      _
    $region23: #{tpu_custom_call.1} parent=1 // pred_check_branch
      %52 = sbr.rel (0) target = $region25
    $region24: #{tpu_custom_call.1} parent=1 // pred_region
      %53 = dma.done [#allocation3], 128
    $region25: #{tpu_custom_call.1} parent=1 // pred_fallthru
      _
    // Predicated region
    $region26: #{tpu_custom_call.1} parent=1 // pred_check
      _
    $region27: #{tpu_custom_call.1} parent=1 // pred_check_branch
      %55 = sbr.rel (0) target = $region29
    $region28: #{tpu_custom_call.1} parent=1 // pred_region
      %56 = dma.done [#allocation6], 512
    $region29: #{tpu_custom_call.1} parent=1 // pred_fallthru
      _
    // Predicated region
    $region30: #{tpu_custom_call.1} parent=1 // pred_check
      _
    $region31: #{tpu_custom_call.1} parent=1 // pred_check_branch
      %58 = sbr.rel (0) target = $region33
    $region32: #{tpu_custom_call.1} parent=1 // pred_region
      %59 = dma.done [#allocation6], 4096
    $region33: #{tpu_custom_call.1} parent=1 // pred_fallthru
      _
    %v60 = vld [vmem:[#allocation2] sm:$0xff]
    %v61 = vld [vmem:[#allocation5] sm:$0xff]
    %v62 = vld [vmem:[#allocation5 + $0x8] sm:$0xff]
    %v63 = vld [vmem:[#allocation5 + $0x10] sm:$0xff]
    %v64 = vld [vmem:[#allocation5 + $0x18] sm:$0xff]
    %v65 = vld [vmem:[%s2] sm:$0x3]
    %v67 = vlaneseq
    %v68 = vshrl.u32 %v67, 7
    %v69 = vsub.s32 0, %v68
    %v70 = vrot.slane %v65, %v69
    %v71 = vlaneseq
    %v72 = vshrl.u32 %v71, 7
    %v73 = vsub.s32 1, %v72
    %v74 = vrot.slane %v65, %v73
    %vm77 = vcmask 130048
    %v79 = vsel %vm77, %v60, 0
    %81 = vmatprep.subr.mxu0 0.0
    %82 = vmatpush1.msra.mxu0 0.0
    %83 = vmatprep.subr.mxu0 0.0
    %84 = vmatpush1.msra.mxu0 0.0
    %85 = vmatprep.subr.mxu0 0.0
    %86 = vmatpush1.msra.mxu0 0.0
    %87 = vmatprep.subr.mxu0 0.0
    %88 = vmatpush1.msra.mxu0 0.0
    %89 = vmatprep.subr.mxu0 0.0
    %90 = vmatpush1.msra.mxu0 0.0
    %91 = vmatprep.subr.mxu0 0.0
    %92 = vmatpush1.msra.mxu0 0.0
    %93 = vmatprep.subr.mxu0 0.0
    %94 = vmatpush1.msra.mxu0 0.0
    %95 = vmatprep.subr.mxu0 0.0
    %96 = vmatpush1.msra.mxu0 0.0
    %97 = vmatprep.subr.mxu0 0.0
    %98 = vmatpush1.msra.mxu0 0.0
    %99 = vmatprep.subr.mxu0 0.0
    %100 = vmatpush1.msra.mxu0 0.0
    %101 = vmatprep.subr.mxu0 0.0
    %102 = vmatpush1.msra.mxu0 0.0
    %103 = vmatprep.subr.mxu0 0.0
    %104 = vmatpush1.msra.mxu0 0.0
    %105 = vmatprep.subr.mxu0 0.0
    %106 = vmatpush1.msra.mxu0 0.0
    %107 = vmatprep.subr.mxu0 0.0
    %108 = vmatpush1.msra.mxu0 0.0
    %109 = vmatprep.subr.mxu0 %v64
    %110 = vmatpush1.msra.mxu0 %v63
    %111 = vmatprep.subr.mxu0 %v62
    %112 = vmatpush1.msra.mxu0 %v61
    %113 = vmatprep.subr.mxu0 0.0
    %114 = vmatpush2.msra.mxu0 0.0
    %115 = vmatprep.subr.mxu0 0.0
    %116 = vmatpush2.msra.mxu0 0.0
    %117 = vmatprep.subr.mxu0 0.0
    %118 = vmatpush2.msra.mxu0 0.0
    %119 = vmatprep.subr.mxu0 0.0
    %120 = vmatpush2.msra.mxu0 0.0
    %121 = vmatprep.subr.mxu0 0.0
    %122 = vmatpush2.msra.mxu0 0.0
    %123 = vmatprep.subr.mxu0 0.0
    %124 = vmatpush2.msra.mxu0 0.0
    %125 = vmatprep.subr.mxu0 0.0
    %126 = vmatpush2.msra.mxu0 0.0
    %127 = vmatprep.subr.mxu0 0.0
    %128 = vmatpush2.msra.mxu0 0.0
    %129 = vmatprep.subr.mxu0 0.0
    %130 = vmatpush2.msra.mxu0 0.0
    %131 = vmatprep.subr.mxu0 0.0
    %132 = vmatpush2.msra.mxu0 0.0
    %133 = vmatprep.subr.mxu0 0.0
    %134 = vmatpush2.msra.mxu0 0.0
    %135 = vmatprep.subr.mxu0 0.0
    %136 = vmatpush2.msra.mxu0 0.0
    %137 = vmatprep.subr.mxu0 0.0
    %138 = vmatpush2.msra.mxu0 0.0
    %139 = vmatprep.subr.mxu0 0.0
    %140 = vmatpush2.msra.mxu0 0.0
    %141 = vmatprep.subr.mxu0 0.0
    %142 = vmatpush2.msra.mxu0 0.0
    %143 = vmatprep.subr.mxu0 0.0
    %144 = vmatpush2.msra.mxu0 0.0
    %145 = vmatprep.mubr.f32.mxu0 0.0
    %146 = vmatmul.mubr.f32.gmra.mxu0 %v79
    %v147 = vpop.f32.mrf.mxu0
    %v148 = vadd.f32 %v70, %v147
    %v149 = vpop.f32.mrf.mxu0
    %v150 = vadd.f32 %v74, %v149
    %151 = vdwg.mxu0
    %v152 = vmul.f32 %v148, 0.01
    %v153 = vmul.f32 %v150, 0.01
    %v154 = vmax.f32 %v148, %v152
    %v155 = vmax.f32 %v150, %v153
    %v156 = vld [vmem:[#allocation7] sm:$0xff]
    %v157 = vld [vmem:[#allocation7 + $0x8] sm:$0xff]
    %v158 = vld [vmem:[#allocation7 + $0x10] sm:$0xff]
    %v159 = vld [vmem:[#allocation7 + $0x18] sm:$0xff]
    %v160 = vld [vmem:[#allocation7 + $0x20] sm:$0xff]
    %v161 = vld [vmem:[#allocation7 + $0x28] sm:$0xff]
    %v162 = vld [vmem:[#allocation7 + $0x30] sm:$0xff]
    %v163 = vld [vmem:[#allocation7 + $0x38] sm:$0xff]
    %v164 = vld [vmem:[#allocation7 + $0x40] sm:$0xff]
    %v165 = vld [vmem:[#allocation7 + $0x48] sm:$0xff]
    %v166 = vld [vmem:[#allocation7 + $0x50] sm:$0xff]
    %v167 = vld [vmem:[#allocation7 + $0x58] sm:$0xff]
    %v168 = vld [vmem:[#allocation7 + $0x60] sm:$0xff]
    %v169 = vld [vmem:[#allocation7 + $0x68] sm:$0xff]
    %v170 = vld [vmem:[#allocation7 + $0x70] sm:$0xff]
    %v171 = vld [vmem:[#allocation7 + $0x78] sm:$0xff]
    %v172 = vld [vmem:[#allocation7 + $0x80] sm:$0xff]
    %v173 = vld [vmem:[#allocation7 + $0x88] sm:$0xff]
    %v174 = vld [vmem:[#allocation7 + $0x90] sm:$0xff]
    %v175 = vld [vmem:[#allocation7 + $0x98] sm:$0xff]
    %v176 = vld [vmem:[#allocation7 + $0xa0] sm:$0xff]
    %v177 = vld [vmem:[#allocation7 + $0xa8] sm:$0xff]
    %v178 = vld [vmem:[#allocation7 + $0xb0] sm:$0xff]
    %v179 = vld [vmem:[#allocation7 + $0xb8] sm:$0xff]
    %v180 = vld [vmem:[#allocation7 + $0xc0] sm:$0xff]
    %v181 = vld [vmem:[#allocation7 + $0xc8] sm:$0xff]
    %v182 = vld [vmem:[#allocation7 + $0xd0] sm:$0xff]
    %v183 = vld [vmem:[#allocation7 + $0xd8] sm:$0xff]
    %v184 = vld [vmem:[#allocation7 + $0xe0] sm:$0xff]
    %v185 = vld [vmem:[#allocation7 + $0xe8] sm:$0xff]
    %v186 = vld [vmem:[#allocation7 + $0xf0] sm:$0xff]
    %v187 = vld [vmem:[#allocation7 + $0xf8] sm:$0xff]
    %v188 = vld [vmem:[%s4] sm:$0x1]
    %v190 = vlaneseq
    %v191 = vshrl.u32 %v190, 7
    %v192 = vsub.s32 0, %v191
    %v193 = vrot.slane %v188, %v192
    %195 = vmatprep.subr.mxu0 0.0
    %196 = vmatpush1.msra.mxu0 %v171
    %197 = vmatprep.subr.mxu0 0.0
    %198 = vmatpush1.msra.mxu0 %v170
    %199 = vmatprep.subr.mxu0 0.0
    %200 = vmatpush1.msra.mxu0 %v169
    %201 = vmatprep.subr.mxu0 0.0
    %202 = vmatpush1.msra.mxu0 %v168
    %203 = vmatprep.subr.mxu0 0.0
    %204 = vmatpush1.msra.mxu0 %v167
    %205 = vmatprep.subr.mxu0 0.0
    %206 = vmatpush1.msra.mxu0 %v166
    %207 = vmatprep.subr.mxu0 0.0
    %208 = vmatpush1.msra.mxu0 %v165
    %209 = vmatprep.subr.mxu0 0.0
    %210 = vmatpush1.msra.mxu0 %v164
    %211 = vmatprep.subr.mxu0 0.0
    %212 = vmatpush1.msra.mxu0 %v163
    %213 = vmatprep.subr.mxu0 0.0
    %214 = vmatpush1.msra.mxu0 %v162
    %215 = vmatprep.subr.mxu0 0.0
    %216 = vmatpush1.msra.mxu0 %v161
    %217 = vmatprep.subr.mxu0 0.0
    %218 = vmatpush1.msra.mxu0 %v160
    %219 = vmatprep.subr.mxu0 0.0
    %220 = vmatpush1.msra.mxu0 %v159
    %221 = vmatprep.subr.mxu0 0.0
    %222 = vmatpush1.msra.mxu0 %v158
    %223 = vmatprep.subr.mxu0 0.0
    %224 = vmatpush1.msra.mxu0 %v157
    %225 = vmatprep.subr.mxu0 0.0
    %226 = vmatpush1.msra.mxu0 %v156
    %227 = vmatprep.subr.mxu0 0.0
    %228 = vmatpush2.msra.mxu0 %v187
    %229 = vmatprep.subr.mxu0 0.0
    %230 = vmatpush2.msra.mxu0 %v186
    %231 = vmatprep.subr.mxu0 0.0
    %232 = vmatpush2.msra.mxu0 %v185
    %233 = vmatprep.subr.mxu0 0.0
    %234 = vmatpush2.msra.mxu0 %v184
    %235 = vmatprep.subr.mxu0 0.0
    %236 = vmatpush2.msra.mxu0 %v183
    %237 = vmatprep.subr.mxu0 0.0
    %238 = vmatpush2.msra.mxu0 %v182
    %239 = vmatprep.subr.mxu0 0.0
    %240 = vmatpush2.msra.mxu0 %v181
    %241 = vmatprep.subr.mxu0 0.0
    %242 = vmatpush2.msra.mxu0 %v180
    %243 = vmatprep.subr.mxu0 0.0
    %244 = vmatpush2.msra.mxu0 %v179
    %245 = vmatprep.subr.mxu0 0.0
    %246 = vmatpush2.msra.mxu0 %v178
    %247 = vmatprep.subr.mxu0 0.0
    %248 = vmatpush2.msra.mxu0 %v177
    %249 = vmatprep.subr.mxu0 0.0
    %250 = vmatpush2.msra.mxu0 %v176
    %251 = vmatprep.subr.mxu0 0.0
    %252 = vmatpush2.msra.mxu0 %v175
    %253 = vmatprep.subr.mxu0 0.0
    %254 = vmatpush2.msra.mxu0 %v174
    %255 = vmatprep.subr.mxu0 0.0
    %256 = vmatpush2.msra.mxu0 %v173
    %257 = vmatprep.subr.mxu0 0.0
    %258 = vmatpush2.msra.mxu0 %v172
    %259 = vmatprep.mubr.f32.mxu0 %v155
    %260 = vmatmul.mubr.f32.gmra.mxu0 %v154
    %v261 = vpop.f32.mrf.mxu0
    %v262 = vadd.f32 %v193, %v261
    %v263 = vpop.f32.mrf.mxu0
    %264 = vdwg.mxu0
    %265 = vst [vmem:[#allocation8] sm:$0xff] %v262
    // Predicated region
    $region34: #{tpu_custom_call.1} parent=1 // pred_check
      _
    $region35: #{tpu_custom_call.1} parent=1 // pred_check_branch
      %267 = sbr.rel (0) target = $region37
    $region36: #{tpu_custom_call.1} parent=1 // pred_region
      %s269 = ssub.s32 128, 128
      %270 = vsyncadd [#allocation4], %s269
      %s272 = sshll.u32 [#allocation8], 4
      %s273 = int_to_ptr.vmem [resolvable:$true] %s272
      %275 = dma.vmem_to_hbm [thread:$0]  %s273, 128, %s5, [#allocation4]
    $region37: #{tpu_custom_call.1} parent=1 // pred_fallthru
      _
    // Predicated region
    $region38: #{tpu_custom_call.1} parent=1 // pred_check
      _
    $region39: #{tpu_custom_call.1} parent=1 // pred_check_branch
      %277 = sbr.rel (0) target = $region41
    $region40: #{tpu_custom_call.1} parent=1 // pred_region
      %278 = dma.done [#allocation4], 128
    $region41: #{tpu_custom_call.1} parent=1 // pred_fallthru
      _
    %279 = vsyncpa [#allocation3], 1
    %280 = vsyncpa [#allocation6], 1
    %281 = vsyncpa [#allocation4], 1

</llo_original>
